<compile_context>
chip_gen: v7x
topology: tpu7x:2x2x1
jax: 0.10.0
libtpu: 0.0.40
codegen_flags: <defaults>
</compile_context>

<pallas_src>
import jax
import jax.numpy as jnp
from jax.experimental import pallas as pl
from jax.experimental.pallas import tpu as pltpu


def _conv1x1(t, w, init):
    """Batched 1x1 conv over a (B, Cin, HW) tile.

    out[b, co, :] = sum_ci w[co, ci] * t[b, ci, :]  (+ init, broadcastable)

    For small channel counts an unrolled broadcast-FMA chain on the VPU avoids
    MXU push/pop latency; `init` (bias, or bias + residual) seeds the
    accumulator so no separate full-tile add is needed.  Larger channel counts
    fall back to a single batched MXU contraction over the whole block.
    """
    cin = t.shape[1]
    if cin <= 16:
        acc = init + w[None, :, 0:1] * t[:, 0:1, :]
        for ci in range(1, cin):
            acc = acc + w[None, :, ci:ci + 1] * t[:, ci:ci + 1, :]
        return acc
    return jnp.einsum("oc,bch->boh", w, t,
                      preferred_element_type=jnp.float32) + init


def noise_basic_block_kernel(
    x_ref,                      # (B_blk, Cp, HW)  packed image block
    n1_ref, n2_ref,             # (Cp, HW) grid-constant noise buffers
    w1_ref, b1_ref,             # conv1 with BN1/BN2 folded: (Cp, Cp), (Cp, 1)
    w2_ref, b2_ref,             # conv2 with BN3/BN4 folded: (Cp, Cp), (Cp, 1)
    out_ref,                    # (B_blk, Cp, HW)
):
    x = x_ref[...].astype(jnp.float32)
    n1 = n1_ref[...][None]                   # broadcast over batch in-kernel
    n2 = n2_ref[...][None]
    b1 = b1_ref[...][None]                   # (1, Cp, 1)
    b2 = b2_ref[...][None]

    # NoiseLayer 1: (x + noise) -> ReLU -> [BN1 folded] -> 1x1 conv [BN2 folded]
    u = jnp.maximum(x + n1, 0.0)
    t = _conv1x1(u, w1_ref[...], b1)

    # MaxPool2d(1, 1) with stride 1 is the identity; BN2 already folded above.
    t = jnp.maximum(t, 0.0)

    # NoiseLayer 2: (t + noise) -> ReLU -> [BN3 folded] -> 1x1 conv [BN4 folded]
    v = jnp.maximum(t + n2, 0.0)
    # Residual (x) and bias folded into the accumulator seed -> one fewer add.
    y = _conv1x1(v, w2_ref[...], x + b2)

    out_ref[...] = jnp.maximum(y, 0.0).astype(out_ref.dtype)


def fold_params(p):
    """Fold the four BN affines into the two 1x1 convs (exact, inference form)."""
    w1, b1, w2, b2 = p["w1"], p["cb1"], p["w2"], p["cb2"]
    s1, o1, s2, o2 = p["s1"], p["o1"], p["s2"], p["o2"]
    s3, o3, s4, o4 = p["s3"], p["o3"], p["s4"], p["o4"]
    # y2 = s2*(W1(s1*u + o1) + b1) + o2 = (s2 W1 s1) u + [s2*(W1 o1 + b1) + o2]
    w1f = s2[:, None] * w1 * s1[None, :]
    b1f = s2 * (w1 @ o1 + b1) + o2
    # y5 = s4*(W2(s3*v + o3) + b2) + o4
    w2f = s4[:, None] * w2 * s3[None, :]
    b2f = s4 * (w2 @ o3 + b2) + o4
    return w1f, b1f[:, None], w2f, b2f[:, None]


def _block_diag(w, P):
    """P copies of w along the diagonal (P == 1 -> w unchanged)."""
    if P == 1:
        return w
    co, ci = w.shape
    out = jnp.zeros((P * co, P * ci), w.dtype)
    for g in range(P):
        out = out.at[g * co:(g + 1) * co, g * ci:(g + 1) * ci].set(w)
    return out


def noise_basic_block(x_nchw, p, *, target_block_bytes=8 << 20):
    N, Cin, H, W = x_nchw.shape
    Cout = p["w1"].shape[0]
    assert Cin == Cout, "identity residual requires in_planes == planes"
    HW = H * W
    dtype = x_nchw.dtype
    itemsize = jnp.dtype(dtype).itemsize

    # Fold the four BN affines into the two 1x1 convs (exact, inference form).
    w1f, b1f, w2f, b2f = fold_params(p)

    # --- sublane packing: fill all 8 f32 sublanes when C < 8 -----------------
    if dtype == jnp.float32 and Cin < 8 and 8 % Cin == 0:
        P = 8 // Cin
    else:
        P = 1
    Cp = P * Cin

    n1 = jnp.tile(p["noise1"].reshape(Cin, HW), (P, 1))     # (Cp, HW)
    n2 = jnp.tile(p["noise2"].reshape(Cout, HW), (P, 1))
    w1p = _block_diag(w1f, P)                                # (Cp, Cp)
    w2p = _block_diag(w2f, P)
    b1p = jnp.tile(b1f, (P, 1))                              # (Cp, 1)
    b2p = jnp.tile(b2f, (P, 1))

    # --- batch-blocking: largest image block within a modest VMEM budget -----
    Npk_raw = -(-N // P)                                     # packed images
    img_bytes = Cp * HW * itemsize
    B_blk = max(1, min(Npk_raw, target_block_bytes // img_bytes))
    # Keep >= 2 grid steps when possible so both v7x TensorCores get work.
    if Npk_raw > 1 and -(-Npk_raw // B_blk) < 2:
        B_blk = -(-Npk_raw // 2)
    grid_len = -(-Npk_raw // B_blk)
    Npk = grid_len * B_blk
    N_pad = Npk * P

    # Channels-first flatten + zero-pad tail + pack: all free/contiguous.
    x3 = x_nchw.reshape(N, Cin, HW)
    if N_pad != N:
        x3 = jnp.concatenate(
            [x3, jnp.zeros((N_pad - N, Cin, HW), dtype)], axis=0)
    xp = x3.reshape(Npk, Cp, HW)

    img_in = pl.BlockSpec((B_blk, Cp, HW), lambda i: (i, 0, 0))
    img_out = pl.BlockSpec((B_blk, Cp, HW), lambda i: (i, 0, 0))

    def const(shape):
        # Grid-invariant operand: block index never changes, so Pallas does not
        # re-issue its DMA on later grid steps.
        return pl.BlockSpec(shape, lambda i: (0, 0))

    out = pl.pallas_call(
        noise_basic_block_kernel,
        out_shape=jax.ShapeDtypeStruct((Npk, Cp, HW), dtype),
        grid_spec=pltpu.PrefetchScalarGridSpec(
            num_scalar_prefetch=0,
            grid=(grid_len,),
            in_specs=[
                img_in,
                const((Cp, HW)), const((Cp, HW)),
                const((Cp, Cp)), const((Cp, 1)),
                const((Cp, Cp)), const((Cp, 1)),
            ],
            out_specs=img_out,
        ),
        compiler_params=pltpu.CompilerParams(
            dimension_semantics=("parallel",),   # shards blocks across v7x TCs
            vmem_limit_bytes=48 << 20,           # above 16/32 MiB scoped defaults,
        ),                                       # below v7x 64 MiB physical
    )(xp, n1, n2, w1p, b1p, w2p, b2p)

    return out.reshape(N_pad, Cout, HW)[:N].reshape(N, Cout, H, W)


def reference(x_nchw, p):
    """Pure-JAX reference using the UNFOLDED BN/conv params (validates folding
    and the sublane/batch packing)."""
    N, Cin, H, W = x_nchw.shape
    Cout = p["w1"].shape[0]
    HW = H * W
    x = x_nchw.reshape(N, Cin, HW).astype(jnp.float32)
    n1 = p["noise1"].reshape(1, Cin, HW)
    n2 = p["noise2"].reshape(1, Cout, HW)
    col = lambda v: v[:, None]

    u = jnp.maximum(x + n1, 0.0)
    t = col(p["s1"]) * u + col(p["o1"])
    y = jnp.einsum("oc,nch->noh", p["w1"], t) + col(p["cb1"])
    y = col(p["s2"]) * y + col(p["o2"])          # BN after (identity) MaxPool(1,1)
    y = jnp.maximum(y, 0.0)
    v = jnp.maximum(y + n2, 0.0)
    t = col(p["s3"]) * v + col(p["o3"])
    y = jnp.einsum("oc,nch->noh", p["w2"], t) + col(p["cb2"])
    y = col(p["s4"]) * y + col(p["o4"])
    y = jnp.maximum(y + x, 0.0)
    return y.reshape(N, Cout, H, W)


def fold_bn(gamma, beta, mean, var, eps=1e-5):
    scale = gamma / jnp.sqrt(var + eps)
    return scale, beta - mean * scale


def make_params(key, Cin, Cout, H, W, level=0.2):
    ks = jax.random.split(key, 10)
    # NoiseLayer noise buffers: PyTorch shape (C, H, W), broadcast over batch.
    n1 = (2.0 * jax.random.uniform(ks[0], (Cin, H, W)) - 1.0) * level
    n2 = (2.0 * jax.random.uniform(ks[1], (Cout, H, W)) - 1.0) * level

    def bn(k, C):
        k1, k2, k3, k4 = jax.random.split(k, 4)
        gamma = 1.0 + 0.1 * jax.random.normal(k1, (C,))
        beta = 0.1 * jax.random.normal(k2, (C,))
        mean = 0.1 * jax.random.normal(k3, (C,))
        var = jax.random.uniform(k4, (C,), minval=0.5, maxval=1.5)
        return fold_bn(gamma, beta, mean, var)

    s1, o1 = bn(ks[2], Cin)      # BN inside NoiseLayer 1
    s2, o2 = bn(ks[3], Cout)     # BN after max-pool
    s3, o3 = bn(ks[4], Cout)     # BN inside NoiseLayer 2
    s4, o4 = bn(ks[5], Cout)     # final BN

    # 1x1 conv weights stored PyTorch-style as (out, in).
    w1 = 0.3 * jax.random.normal(ks[6], (Cout, Cin))
    cb1 = 0.1 * jax.random.normal(ks[7], (Cout,))
    w2 = 0.3 * jax.random.normal(ks[8], (Cout, Cout))
    cb2 = 0.1 * jax.random.normal(ks[9], (Cout,))

    f32 = lambda a: a.astype(jnp.float32)
    return {
        "noise1": f32(n1), "noise2": f32(n2),
        "s1": f32(s1), "o1": f32(o1),
        "w1": f32(w1), "cb1": f32(cb1),
        "s2": f32(s2), "o2": f32(o2),
        "s3": f32(s3), "o3": f32(o3),
        "w2": f32(w2), "cb2": f32(cb2),
        "s4": f32(s4), "o4": f32(o4),
    }


if __name__ == "__main__":
    key = jax.random.PRNGKey(0)
    kx, kp = jax.random.split(key)

    N, C, H, W = 2, 4, 16, 16          # in_planes == planes, stride == 1
    x = jax.random.normal(kx, (N, C, H, W), dtype=jnp.float32)
    params = make_params(kp, C, C, H, W, level=0.2)

    y = noise_basic_block(x, params)
    y = jax.block_until_ready(y)

    y_ref = reference(x, params)
    assert y.shape == (N, C, H, W)
    assert jnp.max(jnp.abs(y - y_ref)) < 1e-4, "mismatch vs reference"

    print("KERNEL_OK")
</pallas_src>

<mosaic_0001>
module attributes {stable_mosaic.version = 11 : i64} {
  func.func @noise_basic_block_kernel(%arg0: i32, %arg1: memref<1x8x256xf32, #tpu.memory_space<vmem>>, %arg2: memref<8x256xf32, #tpu.memory_space<vmem>>, %arg3: memref<8x256xf32, #tpu.memory_space<vmem>>, %arg4: memref<8x8xf32, #tpu.memory_space<vmem>>, %arg5: memref<8x1xf32, #tpu.memory_space<vmem>>, %arg6: memref<8x8xf32, #tpu.memory_space<vmem>>, %arg7: memref<8x1xf32, #tpu.memory_space<vmem>>, %arg8: memref<1x8x256xf32, #tpu.memory_space<vmem>>) attributes {dimension_semantics = [#tpu.dimension_semantics<parallel>], iteration_bounds = array<i64: 1>, scalar_prefetch = 0 : i64, scratch_operands = 0 : i64, tpu.core_type = #tpu.core_type<tc>, window_params = [{transform_indices = @transform_0, window_bounds = array<i64: 1, 8, 256>}, {pipeline_mode = #tpu.pipeline_mode<synchronous>, transform_indices = @transform_1, window_bounds = array<i64: 8, 256>}, {pipeline_mode = #tpu.pipeline_mode<synchronous>, transform_indices = @transform_2, window_bounds = array<i64: 8, 256>}, {pipeline_mode = #tpu.pipeline_mode<synchronous>, transform_indices = @transform_3, window_bounds = array<i64: 8, 8>}, {pipeline_mode = #tpu.pipeline_mode<synchronous>, transform_indices = @transform_4, window_bounds = array<i64: 8, 1>}, {pipeline_mode = #tpu.pipeline_mode<synchronous>, transform_indices = @transform_5, window_bounds = array<i64: 8, 8>}, {pipeline_mode = #tpu.pipeline_mode<synchronous>, transform_indices = @transform_6, window_bounds = array<i64: 8, 1>}, {transform_indices = @transform_7, window_bounds = array<i64: 1, 8, 256>}]} {
    %c0 = arith.constant 0 : index
    %c0_0 = arith.constant 0 : index
    %c0_1 = arith.constant 0 : index
    %0 = vector.load %arg1[%c0, %c0_0, %c0_1] : memref<1x8x256xf32, #tpu.memory_space<vmem>>, vector<1x8x256xf32>
    %c0_2 = arith.constant 0 : index
    %c0_3 = arith.constant 0 : index
    %1 = vector.load %arg2[%c0_2, %c0_3] : memref<8x256xf32, #tpu.memory_space<vmem>>, vector<8x256xf32>
    %2 = vector.shape_cast %1 : vector<8x256xf32> to vector<1x8x256xf32>
    %c0_4 = arith.constant 0 : index
    %c0_5 = arith.constant 0 : index
    %3 = vector.load %arg3[%c0_4, %c0_5] : memref<8x256xf32, #tpu.memory_space<vmem>>, vector<8x256xf32>
    %4 = vector.shape_cast %3 : vector<8x256xf32> to vector<1x8x256xf32>
    %c0_6 = arith.constant 0 : index
    %c0_7 = arith.constant 0 : index
    %5 = vector.load %arg5[%c0_6, %c0_7] : memref<8x1xf32, #tpu.memory_space<vmem>>, vector<8x1xf32>
    %6 = vector.shape_cast %5 : vector<8x1xf32> to vector<1x8x1xf32>
    %c0_8 = arith.constant 0 : index
    %c0_9 = arith.constant 0 : index
    %7 = vector.load %arg7[%c0_8, %c0_9] : memref<8x1xf32, #tpu.memory_space<vmem>>, vector<8x1xf32>
    %8 = vector.shape_cast %7 : vector<8x1xf32> to vector<1x8x1xf32>
    %9 = arith.addf %0, %2 : vector<1x8x256xf32>
    %cst = arith.constant 0.000000e+00 : f32
    %10 = vector.broadcast %cst : f32 to vector<1x8x256xf32>
    %11 = arith.maximumf %9, %10 : vector<1x8x256xf32>
    %c0_10 = arith.constant 0 : index
    %c0_11 = arith.constant 0 : index
    %12 = vector.load %arg4[%c0_10, %c0_11] : memref<8x8xf32, #tpu.memory_space<vmem>>, vector<8x8xf32>
    %13 = vector.extract_strided_slice %12 {offsets = [0, 0], sizes = [8, 1], strides = [1, 1]} : vector<8x8xf32> to vector<8x1xf32>
    %14 = vector.shape_cast %13 : vector<8x1xf32> to vector<1x8x1xf32>
    %15 = vector.extract_strided_slice %11 {offsets = [0, 0, 0], sizes = [1, 1, 256], strides = [1, 1, 1]} : vector<1x8x256xf32> to vector<1x1x256xf32>
    %16 = vector.broadcast %14 : vector<1x8x1xf32> to vector<1x8x256xf32>
    %17 = vector.broadcast %15 : vector<1x1x256xf32> to vector<1x8x256xf32>
    %18 = arith.mulf %16, %17 : vector<1x8x256xf32>
    %19 = vector.broadcast %6 : vector<1x8x1xf32> to vector<1x8x256xf32>
    %20 = arith.addf %19, %18 : vector<1x8x256xf32>
    %21 = vector.extract_strided_slice %12 {offsets = [0, 1], sizes = [8, 1], strides = [1, 1]} : vector<8x8xf32> to vector<8x1xf32>
    %22 = vector.shape_cast %21 : vector<8x1xf32> to vector<1x8x1xf32>
    %23 = vector.extract_strided_slice %11 {offsets = [0, 1, 0], sizes = [1, 1, 256], strides = [1, 1, 1]} : vector<1x8x256xf32> to vector<1x1x256xf32>
    %24 = vector.broadcast %22 : vector<1x8x1xf32> to vector<1x8x256xf32>
    %25 = vector.broadcast %23 : vector<1x1x256xf32> to vector<1x8x256xf32>
    %26 = arith.mulf %24, %25 : vector<1x8x256xf32>
    %27 = arith.addf %20, %26 : vector<1x8x256xf32>
    %28 = vector.extract_strided_slice %12 {offsets = [0, 2], sizes = [8, 1], strides = [1, 1]} : vector<8x8xf32> to vector<8x1xf32>
    %29 = vector.shape_cast %28 : vector<8x1xf32> to vector<1x8x1xf32>
    %30 = vector.extract_strided_slice %11 {offsets = [0, 2, 0], sizes = [1, 1, 256], strides = [1, 1, 1]} : vector<1x8x256xf32> to vector<1x1x256xf32>
    %31 = vector.broadcast %29 : vector<1x8x1xf32> to vector<1x8x256xf32>
    %32 = vector.broadcast %30 : vector<1x1x256xf32> to vector<1x8x256xf32>
    %33 = arith.mulf %31, %32 : vector<1x8x256xf32>
    %34 = arith.addf %27, %33 : vector<1x8x256xf32>
    %35 = vector.extract_strided_slice %12 {offsets = [0, 3], sizes = [8, 1], strides = [1, 1]} : vector<8x8xf32> to vector<8x1xf32>
    %36 = vector.shape_cast %35 : vector<8x1xf32> to vector<1x8x1xf32>
    %37 = vector.extract_strided_slice %11 {offsets = [0, 3, 0], sizes = [1, 1, 256], strides = [1, 1, 1]} : vector<1x8x256xf32> to vector<1x1x256xf32>
    %38 = vector.broadcast %36 : vector<1x8x1xf32> to vector<1x8x256xf32>
    %39 = vector.broadcast %37 : vector<1x1x256xf32> to vector<1x8x256xf32>
    %40 = arith.mulf %38, %39 : vector<1x8x256xf32>
    %41 = arith.addf %34, %40 : vector<1x8x256xf32>
    %42 = vector.extract_strided_slice %12 {offsets = [0, 4], sizes = [8, 1], strides = [1, 1]} : vector<8x8xf32> to vector<8x1xf32>
    %43 = vector.shape_cast %42 : vector<8x1xf32> to vector<1x8x1xf32>
    %44 = vector.extract_strided_slice %11 {offsets = [0, 4, 0], sizes = [1, 1, 256], strides = [1, 1, 1]} : vector<1x8x256xf32> to vector<1x1x256xf32>
    %45 = vector.broadcast %43 : vector<1x8x1xf32> to vector<1x8x256xf32>
    %46 = vector.broadcast %44 : vector<1x1x256xf32> to vector<1x8x256xf32>
    %47 = arith.mulf %45, %46 : vector<1x8x256xf32>
    %48 = arith.addf %41, %47 : vector<1x8x256xf32>
    %49 = vector.extract_strided_slice %12 {offsets = [0, 5], sizes = [8, 1], strides = [1, 1]} : vector<8x8xf32> to vector<8x1xf32>
    %50 = vector.shape_cast %49 : vector<8x1xf32> to vector<1x8x1xf32>
    %51 = vector.extract_strided_slice %11 {offsets = [0, 5, 0], sizes = [1, 1, 256], strides = [1, 1, 1]} : vector<1x8x256xf32> to vector<1x1x256xf32>
    %52 = vector.broadcast %50 : vector<1x8x1xf32> to vector<1x8x256xf32>
    %53 = vector.broadcast %51 : vector<1x1x256xf32> to vector<1x8x256xf32>
    %54 = arith.mulf %52, %53 : vector<1x8x256xf32>
    %55 = arith.addf %48, %54 : vector<1x8x256xf32>
    %56 = vector.extract_strided_slice %12 {offsets = [0, 6], sizes = [8, 1], strides = [1, 1]} : vector<8x8xf32> to vector<8x1xf32>
    %57 = vector.shape_cast %56 : vector<8x1xf32> to vector<1x8x1xf32>
    %58 = vector.extract_strided_slice %11 {offsets = [0, 6, 0], sizes = [1, 1, 256], strides = [1, 1, 1]} : vector<1x8x256xf32> to vector<1x1x256xf32>
    %59 = vector.broadcast %57 : vector<1x8x1xf32> to vector<1x8x256xf32>
    %60 = vector.broadcast %58 : vector<1x1x256xf32> to vector<1x8x256xf32>
    %61 = arith.mulf %59, %60 : vector<1x8x256xf32>
    %62 = arith.addf %55, %61 : vector<1x8x256xf32>
    %63 = vector.extract_strided_slice %12 {offsets = [0, 7], sizes = [8, 1], strides = [1, 1]} : vector<8x8xf32> to vector<8x1xf32>
    %64 = vector.shape_cast %63 : vector<8x1xf32> to vector<1x8x1xf32>
    %65 = vector.extract_strided_slice %11 {offsets = [0, 7, 0], sizes = [1, 1, 256], strides = [1, 1, 1]} : vector<1x8x256xf32> to vector<1x1x256xf32>
    %66 = vector.broadcast %64 : vector<1x8x1xf32> to vector<1x8x256xf32>
    %67 = vector.broadcast %65 : vector<1x1x256xf32> to vector<1x8x256xf32>
    %68 = arith.mulf %66, %67 : vector<1x8x256xf32>
    %69 = arith.addf %62, %68 : vector<1x8x256xf32>
    %cst_12 = arith.constant 0.000000e+00 : f32
    %70 = vector.broadcast %cst_12 : f32 to vector<1x8x256xf32>
    %71 = arith.maximumf %69, %70 : vector<1x8x256xf32>
    %72 = arith.addf %71, %4 : vector<1x8x256xf32>
    %cst_13 = arith.constant 0.000000e+00 : f32
    %73 = vector.broadcast %cst_13 : f32 to vector<1x8x256xf32>
    %74 = arith.maximumf %72, %73 : vector<1x8x256xf32>
    %c0_14 = arith.constant 0 : index
    %c0_15 = arith.constant 0 : index
    %75 = vector.load %arg6[%c0_14, %c0_15] : memref<8x8xf32, #tpu.memory_space<vmem>>, vector<8x8xf32>
    %76 = vector.broadcast %8 : vector<1x8x1xf32> to vector<1x8x256xf32>
    %77 = arith.addf %0, %76 : vector<1x8x256xf32>
    %78 = vector.extract_strided_slice %75 {offsets = [0, 0], sizes = [8, 1], strides = [1, 1]} : vector<8x8xf32> to vector<8x1xf32>
    %79 = vector.shape_cast %78 : vector<8x1xf32> to vector<1x8x1xf32>
    %80 = vector.extract_strided_slice %74 {offsets = [0, 0, 0], sizes = [1, 1, 256], strides = [1, 1, 1]} : vector<1x8x256xf32> to vector<1x1x256xf32>
    %81 = vector.broadcast %79 : vector<1x8x1xf32> to vector<1x8x256xf32>
    %82 = vector.broadcast %80 : vector<1x1x256xf32> to vector<1x8x256xf32>
    %83 = arith.mulf %81, %82 : vector<1x8x256xf32>
    %84 = arith.addf %77, %83 : vector<1x8x256xf32>
    %85 = vector.extract_strided_slice %75 {offsets = [0, 1], sizes = [8, 1], strides = [1, 1]} : vector<8x8xf32> to vector<8x1xf32>
    %86 = vector.shape_cast %85 : vector<8x1xf32> to vector<1x8x1xf32>
    %87 = vector.extract_strided_slice %74 {offsets = [0, 1, 0], sizes = [1, 1, 256], strides = [1, 1, 1]} : vector<1x8x256xf32> to vector<1x1x256xf32>
    %88 = vector.broadcast %86 : vector<1x8x1xf32> to vector<1x8x256xf32>
    %89 = vector.broadcast %87 : vector<1x1x256xf32> to vector<1x8x256xf32>
    %90 = arith.mulf %88, %89 : vector<1x8x256xf32>
    %91 = arith.addf %84, %90 : vector<1x8x256xf32>
    %92 = vector.extract_strided_slice %75 {offsets = [0, 2], sizes = [8, 1], strides = [1, 1]} : vector<8x8xf32> to vector<8x1xf32>
    %93 = vector.shape_cast %92 : vector<8x1xf32> to vector<1x8x1xf32>
    %94 = vector.extract_strided_slice %74 {offsets = [0, 2, 0], sizes = [1, 1, 256], strides = [1, 1, 1]} : vector<1x8x256xf32> to vector<1x1x256xf32>
    %95 = vector.broadcast %93 : vector<1x8x1xf32> to vector<1x8x256xf32>
    %96 = vector.broadcast %94 : vector<1x1x256xf32> to vector<1x8x256xf32>
    %97 = arith.mulf %95, %96 : vector<1x8x256xf32>
    %98 = arith.addf %91, %97 : vector<1x8x256xf32>
    %99 = vector.extract_strided_slice %75 {offsets = [0, 3], sizes = [8, 1], strides = [1, 1]} : vector<8x8xf32> to vector<8x1xf32>
    %100 = vector.shape_cast %99 : vector<8x1xf32> to vector<1x8x1xf32>
    %101 = vector.extract_strided_slice %74 {offsets = [0, 3, 0], sizes = [1, 1, 256], strides = [1, 1, 1]} : vector<1x8x256xf32> to vector<1x1x256xf32>
    %102 = vector.broadcast %100 : vector<1x8x1xf32> to vector<1x8x256xf32>
    %103 = vector.broadcast %101 : vector<1x1x256xf32> to vector<1x8x256xf32>
    %104 = arith.mulf %102, %103 : vector<1x8x256xf32>
    %105 = arith.addf %98, %104 : vector<1x8x256xf32>
    %106 = vector.extract_strided_slice %75 {offsets = [0, 4], sizes = [8, 1], strides = [1, 1]} : vector<8x8xf32> to vector<8x1xf32>
    %107 = vector.shape_cast %106 : vector<8x1xf32> to vector<1x8x1xf32>
    %108 = vector.extract_strided_slice %74 {offsets = [0, 4, 0], sizes = [1, 1, 256], strides = [1, 1, 1]} : vector<1x8x256xf32> to vector<1x1x256xf32>
    %109 = vector.broadcast %107 : vector<1x8x1xf32> to vector<1x8x256xf32>
    %110 = vector.broadcast %108 : vector<1x1x256xf32> to vector<1x8x256xf32>
    %111 = arith.mulf %109, %110 : vector<1x8x256xf32>
    %112 = arith.addf %105, %111 : vector<1x8x256xf32>
    %113 = vector.extract_strided_slice %75 {offsets = [0, 5], sizes = [8, 1], strides = [1, 1]} : vector<8x8xf32> to vector<8x1xf32>
    %114 = vector.shape_cast %113 : vector<8x1xf32> to vector<1x8x1xf32>
    %115 = vector.extract_strided_slice %74 {offsets = [0, 5, 0], sizes = [1, 1, 256], strides = [1, 1, 1]} : vector<1x8x256xf32> to vector<1x1x256xf32>
    %116 = vector.broadcast %114 : vector<1x8x1xf32> to vector<1x8x256xf32>
    %117 = vector.broadcast %115 : vector<1x1x256xf32> to vector<1x8x256xf32>
    %118 = arith.mulf %116, %117 : vector<1x8x256xf32>
    %119 = arith.addf %112, %118 : vector<1x8x256xf32>
    %120 = vector.extract_strided_slice %75 {offsets = [0, 6], sizes = [8, 1], strides = [1, 1]} : vector<8x8xf32> to vector<8x1xf32>
    %121 = vector.shape_cast %120 : vector<8x1xf32> to vector<1x8x1xf32>
    %122 = vector.extract_strided_slice %74 {offsets = [0, 6, 0], sizes = [1, 1, 256], strides = [1, 1, 1]} : vector<1x8x256xf32> to vector<1x1x256xf32>
    %123 = vector.broadcast %121 : vector<1x8x1xf32> to vector<1x8x256xf32>
    %124 = vector.broadcast %122 : vector<1x1x256xf32> to vector<1x8x256xf32>
    %125 = arith.mulf %123, %124 : vector<1x8x256xf32>
    %126 = arith.addf %119, %125 : vector<1x8x256xf32>
    %127 = vector.extract_strided_slice %75 {offsets = [0, 7], sizes = [8, 1], strides = [1, 1]} : vector<8x8xf32> to vector<8x1xf32>
    %128 = vector.shape_cast %127 : vector<8x1xf32> to vector<1x8x1xf32>
    %129 = vector.extract_strided_slice %74 {offsets = [0, 7, 0], sizes = [1, 1, 256], strides = [1, 1, 1]} : vector<1x8x256xf32> to vector<1x1x256xf32>
    %130 = vector.broadcast %128 : vector<1x8x1xf32> to vector<1x8x256xf32>
    %131 = vector.broadcast %129 : vector<1x1x256xf32> to vector<1x8x256xf32>
    %132 = arith.mulf %130, %131 : vector<1x8x256xf32>
    %133 = arith.addf %126, %132 : vector<1x8x256xf32>
    %cst_16 = arith.constant 0.000000e+00 : f32
    %134 = vector.broadcast %cst_16 : f32 to vector<1x8x256xf32>
    %135 = arith.maximumf %133, %134 : vector<1x8x256xf32>
    %c0_17 = arith.constant 0 : index
    %c0_18 = arith.constant 0 : index
    %c0_19 = arith.constant 0 : index
    %136 = vector.load %arg8[%c0_17, %c0_18, %c0_19] : memref<1x8x256xf32, #tpu.memory_space<vmem>>, vector<1x8x256xf32>
    tpu.vector_store %arg8[%c0_17, %c0_18, %c0_19], %135 {strides = array<i32>} : memref<1x8x256xf32, #tpu.memory_space<vmem>>, vector<1x8x256xf32>,
    return
  }
  func.func @transform_0(%arg0: i32) -> (i32, i32, i32) {
    %c0_i32 = arith.constant 0 : i32
    %c0_i32_0 = arith.constant 0 : i32
    %c0_i32_1 = arith.constant 0 : i32
    return %arg0, %c0_i32, %c0_i32_0 : i32, i32, i32
  }
  func.func @transform_1(%arg0: i32) -> (i32, i32) {
    %c0_i32 = arith.constant 0 : i32
    %c0_i32_0 = arith.constant 0 : i32
    %c0_i32_1 = arith.constant 0 : i32
    return %c0_i32, %c0_i32_0 : i32, i32
  }
  func.func @transform_2(%arg0: i32) -> (i32, i32) {
    %c0_i32 = arith.constant 0 : i32
    %c0_i32_0 = arith.constant 0 : i32
    %c0_i32_1 = arith.constant 0 : i32
    return %c0_i32, %c0_i32_0 : i32, i32
  }
  func.func @transform_3(%arg0: i32) -> (i32, i32) {
    %c0_i32 = arith.constant 0 : i32
    %c0_i32_0 = arith.constant 0 : i32
    %c0_i32_1 = arith.constant 0 : i32
    return %c0_i32, %c0_i32_0 : i32, i32
  }
  func.func @transform_4(%arg0: i32) -> (i32, i32) {
    %c0_i32 = arith.constant 0 : i32
    %c0_i32_0 = arith.constant 0 : i32
    %c0_i32_1 = arith.constant 0 : i32
    return %c0_i32, %c0_i32_0 : i32, i32
  }
  func.func @transform_5(%arg0: i32) -> (i32, i32) {
    %c0_i32 = arith.constant 0 : i32
    %c0_i32_0 = arith.constant 0 : i32
    %c0_i32_1 = arith.constant 0 : i32
    return %c0_i32, %c0_i32_0 : i32, i32
  }
  func.func @transform_6(%arg0: i32) -> (i32, i32) {
    %c0_i32 = arith.constant 0 : i32
    %c0_i32_0 = arith.constant 0 : i32
    %c0_i32_1 = arith.constant 0 : i32
    return %c0_i32, %c0_i32_0 : i32, i32
  }
  func.func @transform_7(%arg0: i32) -> (i32, i32, i32) {
    %c0_i32 = arith.constant 0 : i32
    %c0_i32_0 = arith.constant 0 : i32
    %c0_i32_1 = arith.constant 0 : i32
    return %arg0, %c0_i32, %c0_i32_0 : i32, i32, i32
  }
}

</mosaic_0001>

<llo_original>
// kernel: tpu_custom_call.1
$region0: #{tpu_custom_call.1}
  #allocation0 [shape = 'u32[]', space=smem, size = 0x4, offset = 0x4, fixed_abs, tag = 'smem constant byte address 0x4 - core index']
  #allocation1 [shape = 'u32[144,128]{1,0:T(1,128)}', space=vmem, size = 0x12000, scoped, tag = 'internal scratch']
  %s0 = inlined_call_operand.vmem [shape: f32[1,8,256], index: 0, kind: input, shape index: {}]
  %s1 = inlined_call_operand.hbm [shape: f32[8,256], index: 1, kind: input, shape index: {}]
  %s2 = inlined_call_operand.hbm [shape: f32[8,256], index: 2, kind: input, shape index: {}]
  %s3 = inlined_call_operand.vmem [shape: f32[8,8], index: 3, kind: input, shape index: {}]
  %s4 = inlined_call_operand.vmem [shape: f32[8,1], index: 4, kind: input, shape index: {}]
  %s5 = inlined_call_operand.vmem [shape: f32[8,8], index: 5, kind: input, shape index: {}]
  %s6 = inlined_call_operand.vmem [shape: f32[8,1], index: 6, kind: input, shape index: {}]
  %s7 = inlined_call_operand.hbm [shape: f32[1,8,256], index: 7, kind: output, shape index: {}]
  %s8 = sld [smem:[#allocation0]]
  $region46: #{tpu_custom_call.1} parent=0
    _
  %s10 = ssub.s32 1, %s8
  %s11 = scalar_select 0, %s10, %s8
  $region1: #{tpu_custom_call.1} parent=0
    #allocation2 [shape = 'u8[8192]{0}', space=vmem, size = 0x2000, scoped, tag = 'input window, operand 1, single buffered']
    #allocation3 [shape = 's32[1]{0}', space=sflag, size = 0x4, scoped, tag = 'scoped memory for tpu_custom_call.1']
    #allocation4 [shape = 's32[1]{0}', space=sflag, size = 0x4, scoped, tag = 'scoped memory for tpu_custom_call.1']
    #allocation5 [shape = 'u8[8192]{0}', space=vmem, size = 0x2000, scoped, tag = 'input window, operand 2, single buffered']
    #allocation6 [shape = 's32[1]{0}', space=sflag, size = 0x4, scoped, tag = 'scoped memory for tpu_custom_call.1']
    #allocation7 [shape = 'u8[8192]{0}', space=vmem, size = 0x2000, scoped, tag = 'output window, operand 0, single buffered']
    %12 = vsyncpa [#allocation3], 0
    %13 = vsyncpa [#allocation6], 0
    %14 = vsyncpa [#allocation4], 0
    // Predicated region
    $region2: #{tpu_custom_call.1} parent=1 // pred_check
      _
    $region3: #{tpu_custom_call.1} parent=1 // pred_check_branch
      %16 = sbr.rel (0) target = $region5
    $region4: #{tpu_custom_call.1} parent=1 // pred_region
      _
    $region5: #{tpu_custom_call.1} parent=1 // pred_fallthru
      _
    // Predicated region
    $region6: #{tpu_custom_call.1} parent=1 // pred_check
      _
    $region7: #{tpu_custom_call.1} parent=1 // pred_check_branch
      %18 = sbr.rel (0) target = $region9
    $region8: #{tpu_custom_call.1} parent=1 // pred_region
      %s20 = ssub.s32 256, 256
      %21 = vsyncadd [#allocation3], %s20
      %s23 = sshll.u32 [#allocation2], 4
      %s24 = int_to_ptr.vmem [resolvable:$true] %s23
      %26 = dma.hbm_to_vmem [thread:$0]  %s1, 256, %s24, [#allocation3]
    $region9: #{tpu_custom_call.1} parent=1 // pred_fallthru
      _
    // Predicated region
    $region10: #{tpu_custom_call.1} parent=1 // pred_check
      _
    $region11: #{tpu_custom_call.1} parent=1 // pred_check_branch
      %28 = sbr.rel (0) target = $region13
    $region12: #{tpu_custom_call.1} parent=1 // pred_region
      %s30 = ssub.s32 256, 256
      %31 = vsyncadd [#allocation6], %s30
      %s33 = sshll.u32 [#allocation5], 4
      %s34 = int_to_ptr.vmem [resolvable:$true] %s33
      %36 = dma.hbm_to_vmem [thread:$0]  %s2, 256, %s34, [#allocation6]
    $region13: #{tpu_custom_call.1} parent=1 // pred_fallthru
      _
    // Predicated region
    $region14: #{tpu_custom_call.1} parent=1 // pred_check
      _
    $region15: #{tpu_custom_call.1} parent=1 // pred_check_branch
      %38 = sbr.rel (0) target = $region17
    $region16: #{tpu_custom_call.1} parent=1 // pred_region
      _
    $region17: #{tpu_custom_call.1} parent=1 // pred_fallthru
      _
    // Predicated region
    $region18: #{tpu_custom_call.1} parent=1 // pred_check
      _
    $region19: #{tpu_custom_call.1} parent=1 // pred_check_branch
      %40 = sbr.rel (0) target = $region21
    $region20: #{tpu_custom_call.1} parent=1 // pred_region
      _
    $region21: #{tpu_custom_call.1} parent=1 // pred_fallthru
      _
    // Predicated region
    $region22: #{tpu_custom_call.1} parent=1 // pred_check
      _
    $region23: #{tpu_custom_call.1} parent=1 // pred_check_branch
      %42 = sbr.rel (0) target = $region25
    $region24: #{tpu_custom_call.1} parent=1 // pred_region
      _
    $region25: #{tpu_custom_call.1} parent=1 // pred_fallthru
      _
    // Predicated region
    $region26: #{tpu_custom_call.1} parent=1 // pred_check
      _
    $region27: #{tpu_custom_call.1} parent=1 // pred_check_branch
      %44 = sbr.rel (0) target = $region29
    $region28: #{tpu_custom_call.1} parent=1 // pred_region
      _
    $region29: #{tpu_custom_call.1} parent=1 // pred_fallthru
      _
    // Predicated region
    $region30: #{tpu_custom_call.1} parent=1 // pred_check
      _
    $region31: #{tpu_custom_call.1} parent=1 // pred_check_branch
      %46 = sbr.rel (0) target = $region33
    $region32: #{tpu_custom_call.1} parent=1 // pred_region
      %47 = dma.done [#allocation3], 256
    $region33: #{tpu_custom_call.1} parent=1 // pred_fallthru
      _
    // Predicated region
    $region34: #{tpu_custom_call.1} parent=1 // pred_check
      _
    $region35: #{tpu_custom_call.1} parent=1 // pred_check_branch
      %49 = sbr.rel (0) target = $region37
    $region36: #{tpu_custom_call.1} parent=1 // pred_region
      %50 = dma.done [#allocation6], 256
    $region37: #{tpu_custom_call.1} parent=1 // pred_fallthru
      _
    %v51 = vld [vmem:[%s0] sm:$0xff]
    %v52 = vld [vmem:[%s0 + $0x8] sm:$0xff]
    %v53 = vld [vmem:[#allocation2] sm:$0xff]
    %v54 = vld [vmem:[#allocation2 + $0x8] sm:$0xff]
    %v55 = vld [vmem:[#allocation5] sm:$0xff]
    %v56 = vld [vmem:[#allocation5 + $0x8] sm:$0xff]
    %v57 = vld [vmem:[%s4] sm:$0xff]
    %v58 = vld [vmem:[%s6] sm:$0xff]
    %v59 = vadd.f32 %v51, %v53
    %v60 = vadd.f32 %v52, %v54
    %v61 = vmax.f32 %v59, 0.0
    %v62 = vmax.f32 %v60, 0.0
    %v63 = vld [vmem:[%s3] sm:$0xff]
    %65 = vset.pattern.permute.xlu0 0
    %66 = vperm.xlu0 %65, %v63
    %v67 = vpop.permute.xlu0 %66
    %v69 = vlaneseq
    %v70 = vshrl.u32 %v69, 7
    %v71 = vsub.s32 0, %v70
    %v72 = vrot.slane %v61, %v71
    %v73 = vlaneseq
    %v74 = vshrl.u32 %v73, 7
    %v75 = vsub.s32 0, %v74
    %v76 = vrot.slane %v62, %v75
    %v77 = vmul.f32 %v67, %v72
    %v78 = vmul.f32 %v67, %v76
    %80 = vset.pattern.permute.xlu0 0
    %81 = vperm.xlu0 %80, %v57
    %v82 = vpop.permute.xlu0 %81
    %v84 = vadd.f32 %v82, %v77
    %v85 = vadd.f32 %v82, %v78
    %86 = vset.pattern.permute.xlu0 1
    %87 = vperm.xlu0 %86, %v63
    %v88 = vpop.permute.xlu0 %87
    %v90 = vlaneseq
    %v91 = vshrl.u32 %v90, 7
    %v92 = vsub.s32 1, %v91
    %v93 = vrot.slane %v61, %v92
    %v94 = vlaneseq
    %v95 = vshrl.u32 %v94, 7
    %v96 = vsub.s32 1, %v95
    %v97 = vrot.slane %v62, %v96
    %v98 = vmul.f32 %v88, %v93
    %v99 = vmul.f32 %v88, %v97
    %v100 = vadd.f32 %v84, %v98
    %v101 = vadd.f32 %v85, %v99
    %102 = vset.pattern.permute.xlu0 2
    %103 = vperm.xlu0 %102, %v63
    %v104 = vpop.permute.xlu0 %103
    %v106 = vlaneseq
    %v107 = vshrl.u32 %v106, 7
    %v108 = vsub.s32 2, %v107
    %v109 = vrot.slane %v61, %v108
    %v110 = vlaneseq
    %v111 = vshrl.u32 %v110, 7
    %v112 = vsub.s32 2, %v111
    %v113 = vrot.slane %v62, %v112
    %v114 = vmul.f32 %v104, %v109
    %v115 = vmul.f32 %v104, %v113
    %v116 = vadd.f32 %v100, %v114
    %v117 = vadd.f32 %v101, %v115
    %118 = vset.pattern.permute.xlu0 3
    %119 = vperm.xlu0 %118, %v63
    %v120 = vpop.permute.xlu0 %119
    %v122 = vlaneseq
    %v123 = vshrl.u32 %v122, 7
    %v124 = vsub.s32 3, %v123
    %v125 = vrot.slane %v61, %v124
    %v126 = vlaneseq
    %v127 = vshrl.u32 %v126, 7
    %v128 = vsub.s32 3, %v127
    %v129 = vrot.slane %v62, %v128
    %v130 = vmul.f32 %v120, %v125
    %v131 = vmul.f32 %v120, %v129
    %v132 = vadd.f32 %v116, %v130
    %v133 = vadd.f32 %v117, %v131
    %134 = vset.pattern.permute.xlu0 4
    %135 = vperm.xlu0 %134, %v63
    %v136 = vpop.permute.xlu0 %135
    %v138 = vlaneseq
    %v139 = vshrl.u32 %v138, 7
    %v140 = vsub.s32 4, %v139
    %v141 = vrot.slane %v61, %v140
    %v142 = vlaneseq
    %v143 = vshrl.u32 %v142, 7
    %v144 = vsub.s32 4, %v143
    %v145 = vrot.slane %v62, %v144
    %v146 = vmul.f32 %v136, %v141
    %v147 = vmul.f32 %v136, %v145
    %v148 = vadd.f32 %v132, %v146
    %v149 = vadd.f32 %v133, %v147
    %150 = vset.pattern.permute.xlu0 5
    %151 = vperm.xlu0 %150, %v63
    %v152 = vpop.permute.xlu0 %151
    %v154 = vlaneseq
    %v155 = vshrl.u32 %v154, 7
    %v156 = vsub.s32 5, %v155
    %v157 = vrot.slane %v61, %v156
    %v158 = vlaneseq
    %v159 = vshrl.u32 %v158, 7
    %v160 = vsub.s32 5, %v159
    %v161 = vrot.slane %v62, %v160
    %v162 = vmul.f32 %v152, %v157
    %v163 = vmul.f32 %v152, %v161
    %v164 = vadd.f32 %v148, %v162
    %v165 = vadd.f32 %v149, %v163
    %166 = vset.pattern.permute.xlu0 6
    %167 = vperm.xlu0 %166, %v63
    %v168 = vpop.permute.xlu0 %167
    %v170 = vlaneseq
    %v171 = vshrl.u32 %v170, 7
    %v172 = vsub.s32 6, %v171
    %v173 = vrot.slane %v61, %v172
    %v174 = vlaneseq
    %v175 = vshrl.u32 %v174, 7
    %v176 = vsub.s32 6, %v175
    %v177 = vrot.slane %v62, %v176
    %v178 = vmul.f32 %v168, %v173
    %v179 = vmul.f32 %v168, %v177
    %v180 = vadd.f32 %v164, %v178
    %v181 = vadd.f32 %v165, %v179
    %182 = vset.pattern.permute.xlu0 7
    %183 = vperm.xlu0 %182, %v63
    %v184 = vpop.permute.xlu0 %183
    %v186 = vlaneseq
    %v187 = vshrl.u32 %v186, 7
    %v188 = vsub.s32 7, %v187
    %v189 = vrot.slane %v61, %v188
    %v190 = vlaneseq
    %v191 = vshrl.u32 %v190, 7
    %v192 = vsub.s32 7, %v191
    %v193 = vrot.slane %v62, %v192
    %v194 = vmul.f32 %v184, %v189
    %v195 = vmul.f32 %v184, %v193
    %v196 = vadd.f32 %v180, %v194
    %v197 = vadd.f32 %v181, %v195
    %v198 = vmax.f32 %v196, 0.0
    %v199 = vmax.f32 %v197, 0.0
    %v200 = vadd.f32 %v198, %v55
    %v201 = vadd.f32 %v199, %v56
    %v202 = vmax.f32 %v200, 0.0
    %v203 = vmax.f32 %v201, 0.0
    %v204 = vld [vmem:[%s5] sm:$0xff]
    %206 = vset.pattern.permute.xlu0 0
    %207 = vperm.xlu0 %206, %v58
    %v208 = vpop.permute.xlu0 %207
    %v210 = vadd.f32 %v51, %v208
    %v211 = vadd.f32 %v52, %v208
    %213 = vset.pattern.permute.xlu0 0
    %214 = vperm.xlu0 %213, %v204
    %v215 = vpop.permute.xlu0 %214
    %v217 = vlaneseq
    %v218 = vshrl.u32 %v217, 7
    %v219 = vsub.s32 0, %v218
    %v220 = vrot.slane %v202, %v219
    %v221 = vlaneseq
    %v222 = vshrl.u32 %v221, 7
    %v223 = vsub.s32 0, %v222
    %v224 = vrot.slane %v203, %v223
    %v225 = vmul.f32 %v215, %v220
    %v226 = vmul.f32 %v215, %v224
    %v227 = vadd.f32 %v210, %v225
    %v228 = vadd.f32 %v211, %v226
    %229 = vset.pattern.permute.xlu0 1
    %230 = vperm.xlu0 %229, %v204
    %v231 = vpop.permute.xlu0 %230
    %v233 = vlaneseq
    %v234 = vshrl.u32 %v233, 7
    %v235 = vsub.s32 1, %v234
    %v236 = vrot.slane %v202, %v235
    %v237 = vlaneseq
    %v238 = vshrl.u32 %v237, 7
    %v239 = vsub.s32 1, %v238
    %v240 = vrot.slane %v203, %v239
    %v241 = vmul.f32 %v231, %v236
    %v242 = vmul.f32 %v231, %v240
    %v243 = vadd.f32 %v227, %v241
    %v244 = vadd.f32 %v228, %v242
    %245 = vset.pattern.permute.xlu0 2
    %246 = vperm.xlu0 %245, %v204
    %v247 = vpop.permute.xlu0 %246
    %v249 = vlaneseq
    %v250 = vshrl.u32 %v249, 7
    %v251 = vsub.s32 2, %v250
    %v252 = vrot.slane %v202, %v251
    %v253 = vlaneseq
    %v254 = vshrl.u32 %v253, 7
    %v255 = vsub.s32 2, %v254
    %v256 = vrot.slane %v203, %v255
    %v257 = vmul.f32 %v247, %v252
    %v258 = vmul.f32 %v247, %v256
    %v259 = vadd.f32 %v243, %v257
    %v260 = vadd.f32 %v244, %v258
    %261 = vset.pattern.permute.xlu0 3
    %262 = vperm.xlu0 %261, %v204
    %v263 = vpop.permute.xlu0 %262
    %v265 = vlaneseq
    %v266 = vshrl.u32 %v265, 7
    %v267 = vsub.s32 3, %v266
    %v268 = vrot.slane %v202, %v267
    %v269 = vlaneseq
    %v270 = vshrl.u32 %v269, 7
    %v271 = vsub.s32 3, %v270
    %v272 = vrot.slane %v203, %v271
    %v273 = vmul.f32 %v263, %v268
    %v274 = vmul.f32 %v263, %v272
    %v275 = vadd.f32 %v259, %v273
    %v276 = vadd.f32 %v260, %v274
    %277 = vset.pattern.permute.xlu0 4
    %278 = vperm.xlu0 %277, %v204
    %v279 = vpop.permute.xlu0 %278
    %v281 = vlaneseq
    %v282 = vshrl.u32 %v281, 7
    %v283 = vsub.s32 4, %v282
    %v284 = vrot.slane %v202, %v283
    %v285 = vlaneseq
    %v286 = vshrl.u32 %v285, 7
    %v287 = vsub.s32 4, %v286
    %v288 = vrot.slane %v203, %v287
    %v289 = vmul.f32 %v279, %v284
    %v290 = vmul.f32 %v279, %v288
    %v291 = vadd.f32 %v275, %v289
    %v292 = vadd.f32 %v276, %v290
    %293 = vset.pattern.permute.xlu0 5
    %294 = vperm.xlu0 %293, %v204
    %v295 = vpop.permute.xlu0 %294
    %v297 = vlaneseq
    %v298 = vshrl.u32 %v297, 7
    %v299 = vsub.s32 5, %v298
    %v300 = vrot.slane %v202, %v299
    %v301 = vlaneseq
    %v302 = vshrl.u32 %v301, 7
    %v303 = vsub.s32 5, %v302
    %v304 = vrot.slane %v203, %v303
    %v305 = vmul.f32 %v295, %v300
    %v306 = vmul.f32 %v295, %v304
    %v307 = vadd.f32 %v291, %v305
    %v308 = vadd.f32 %v292, %v306
    %309 = vset.pattern.permute.xlu0 6
    %310 = vperm.xlu0 %309, %v204
    %v311 = vpop.permute.xlu0 %310
    %v313 = vlaneseq
    %v314 = vshrl.u32 %v313, 7
    %v315 = vsub.s32 6, %v314
    %v316 = vrot.slane %v202, %v315
    %v317 = vlaneseq
    %v318 = vshrl.u32 %v317, 7
    %v319 = vsub.s32 6, %v318
    %v320 = vrot.slane %v203, %v319
    %v321 = vmul.f32 %v311, %v316
    %v322 = vmul.f32 %v311, %v320
    %v323 = vadd.f32 %v307, %v321
    %v324 = vadd.f32 %v308, %v322
    %325 = vset.pattern.permute.xlu0 7
    %326 = vperm.xlu0 %325, %v204
    %v327 = vpop.permute.xlu0 %326
    %v329 = vlaneseq
    %v330 = vshrl.u32 %v329, 7
    %v331 = vsub.s32 7, %v330
    %v332 = vrot.slane %v202, %v331
    %v333 = vlaneseq
    %v334 = vshrl.u32 %v333, 7
    %v335 = vsub.s32 7, %v334
    %v336 = vrot.slane %v203, %v335
    %v337 = vmul.f32 %v327, %v332
    %v338 = vmul.f32 %v327, %v336
    %v339 = vadd.f32 %v323, %v337
    %v340 = vadd.f32 %v324, %v338
    %v341 = vmax.f32 %v339, 0.0
    %v342 = vmax.f32 %v340, 0.0
    %343 = vst [vmem:[#allocation7] sm:$0xff] %v341
    %344 = vst [vmem:[#allocation7 + $0x8] sm:$0xff] %v342
    // Predicated region
    $region38: #{tpu_custom_call.1} parent=1 // pred_check
      _
    $region39: #{tpu_custom_call.1} parent=1 // pred_check_branch
      %346 = sbr.rel (0) target = $region41
    $region40: #{tpu_custom_call.1} parent=1 // pred_region
      %s348 = ssub.s32 256, 256
      %349 = vsyncadd [#allocation4], %s348
      %s351 = sshll.u32 [#allocation7], 4
      %s352 = int_to_ptr.vmem [resolvable:$true] %s351
      %354 = dma.vmem_to_hbm [thread:$0]  %s352, 256, %s7, [#allocation4]
    $region41: #{tpu_custom_call.1} parent=1 // pred_fallthru
      _
    // Predicated region
    $region42: #{tpu_custom_call.1} parent=1 // pred_check
      _
    $region43: #{tpu_custom_call.1} parent=1 // pred_check_branch
      %356 = sbr.rel (0) target = $region45
    $region44: #{tpu_custom_call.1} parent=1 // pred_region
      %357 = dma.done [#allocation4], 256
    $region45: #{tpu_custom_call.1} parent=1 // pred_fallthru
      _
    %358 = vsyncpa [#allocation3], 1
    %359 = vsyncpa [#allocation6], 1
    %360 = vsyncpa [#allocation4], 1

</llo_original>
